<compile_context>
chip_gen: v6e
topology: v6e:2x2x1
jax: 0.10.0
libtpu: 0.0.40
codegen_flags: <defaults>
</compile_context>

<pallas_src>
import functools
from typing import NamedTuple

import jax
import jax.numpy as jnp
from jax.experimental import pallas as pl
from jax.experimental.pallas import tpu as pltpu

EPS = 1e-5
NEG_SLOPE = 0.1


def _round_up(x, m):
    return (x + m - 1) // m * m


def _tpu_vmem_bytes():
    try:
        info = pltpu.get_tpu_info()
        return int(getattr(info, "vmem_capacity_bytes", 64 << 20))
    except Exception:
        return 64 << 20  # conservative fallback: v7x per-TensorCore VMEM


# --------------------------------------------------------------------------
# Shared epilogue: folded BatchNorm1d (training stats) + LeakyReLU(0.1)
# --------------------------------------------------------------------------
def _bn_lrelu(y, gamma, beta, b_true, b_pad):
    """y: [B_pad, tn] f32; gamma/beta: [1, tn] f32. Padded rows of y are zero."""
    inv_b = jnp.float32(1.0 / b_true)
    # Padded batch rows are exactly zero, so a plain column sum already equals
    # the sum over the true batch.
    mean = jnp.sum(y, axis=0, keepdims=True) * inv_b          # [1, tn]
    centered = y - mean
    if b_pad != b_true:
        # Padded rows would contribute (-mean)^2 to the variance; mask them.
        row_ids = jax.lax.broadcasted_iota(jnp.int32, y.shape, 0)
        centered = jnp.where(row_ids < b_true, centered, 0.0)
    var = jnp.sum(centered * centered, axis=0, keepdims=True) * inv_b
    inv_std = jax.lax.rsqrt(var + EPS)                        # EUP slot (cheap)
    scale = gamma * inv_std                                   # [1, tn]
    shift = beta - mean * scale                               # [1, tn]
    z = y * scale + shift                                     # folded BN: mul+add
    return jnp.maximum(z, NEG_SLOPE * z)                      # LeakyReLU, 1 op


# --------------------------------------------------------------------------
# Kernels
# --------------------------------------------------------------------------
def _layer_kernel_tiled(x_ref, w_ref, gamma_ref, beta_ref, o_ref, *, b_true):
    """grid = (N tiles [parallel], K tiles [reduction]); accumulates into o_ref."""
    k = pl.program_id(1)

    @pl.when(k == 0)
    def _init():
        o_ref[...] = jnp.zeros_like(o_ref)

    # bf16 (or f32) operands, f32 accumulation directly into the VMEM-resident
    # output block (its block index is constant across k) -> no scratch needed.
    o_ref[...] += jnp.dot(x_ref[...], w_ref[...],
                          preferred_element_type=jnp.float32)

    @pl.when(k == pl.num_programs(1) - 1)
    def _epilogue():
        o_ref[...] = _bn_lrelu(o_ref[...], gamma_ref[...], beta_ref[...],
                               b_true, o_ref.shape[0]).astype(o_ref.dtype)


def _layer_kernel_single(x_ref, w_ref, gamma_ref, beta_ref, o_ref, *, b_true):
    """Whole problem in one block: no grid, no padding."""
    y = jnp.dot(x_ref[...], w_ref[...], preferred_element_type=jnp.float32)
    o_ref[...] = _bn_lrelu(y, gamma_ref[...], beta_ref[...],
                           b_true, y.shape[0]).astype(o_ref.dtype)


# --------------------------------------------------------------------------
# Parameter prep (hoisted out of the per-call path)
# --------------------------------------------------------------------------
class LayerParams(NamedTuple):
    w: jax.Array       # [K_pad, N_pad] compute_dtype
    gamma: jax.Array   # [1, N_pad] f32
    beta: jax.Array    # [1, N_pad] f32
    in_dim: int
    out_dim: int


def prepare_layer_params(w, gamma, beta, *, compute_dtype=jnp.bfloat16):
    """One-time weight prep: pad to 128-multiples + cast. Call once, reuse."""
    K, N = w.shape
    K_pad = _round_up(K, 128)
    N_pad = _round_up(N, 128)
    wp = jnp.pad(w, ((0, K_pad - K), (0, N_pad - N))).astype(compute_dtype)
    gp = jnp.pad(gamma.astype(jnp.float32), (0, N_pad - N)).reshape(1, N_pad)
    bp = jnp.pad(beta.astype(jnp.float32), (0, N_pad - N)).reshape(1, N_pad)
    return LayerParams(wp, gp, bp, K, N)


# --------------------------------------------------------------------------
# Tile selection / VMEM budgeting
# --------------------------------------------------------------------------
def _vmem_usage(B_pad, tk, tn, nbuf_w, elem_bytes):
    return (2 * B_pad * tk * elem_bytes      # x tile, double-buffered
            + nbuf_w * tk * tn * elem_bytes  # W tile, nbuf_w-buffered
            + 2 * B_pad * tn * 4             # out/acc tile (f32), double-buffered
            + 2 * 2 * tn * 4)                # gamma/beta tiles


def _select_tiles(B_pad, K_pad, N_pad, elem_bytes):
    phys = _tpu_vmem_bytes()
    budget = phys * 3 // 4                   # ~96 MiB on v5e/v6e, ~48 MiB on v7x
    tn_cap = 2048
    tk_cap = 1024
    # On 64-MiB-VMEM chips (v7x, 2 TensorCores per chip) keep >= 2 N tiles so
    # the "parallel" axis can shard across cores.
    if phys <= (64 << 20) and N_pad >= 256:
        tn_cap = min(tn_cap, N_pad // 2)

    tn_cands = sorted([d for d in range(128, min(N_pad, tn_cap) + 1, 128)
                       if N_pad % d == 0], reverse=True) or [128]
    tk_cands = sorted([d for d in range(128, min(K_pad, tk_cap) + 1, 128)
                       if K_pad % d == 0], reverse=True) or [128]

    nbuf_w = 3 if B_pad <= 512 else 2        # small batch => W-DMA bound
    for tn in tn_cands:                      # big tn first: cuts x re-streaming
        for tk in tk_cands:                  # then big tk: fewer grid steps
            if _vmem_usage(B_pad, tk, tn, nbuf_w, elem_bytes) <= budget:
                return tn, tk, nbuf_w, phys
    # TODO(synk): tile the batch (two-pass BN) when B is too large to fit VMEM.
    return 128, 128, 2, phys


def _w_block_spec(tk, tn, nbuf_w):
    idx = lambda n, k: (k, n)
    if nbuf_w > 2:
        try:
            return pl.BlockSpec((tk, tn), idx, pipeline_mode=pl.Buffered(nbuf_w))
        except TypeError:  # older BlockSpec signature without pipeline_mode
            pass
    return pl.BlockSpec((tk, tn), idx)


# --------------------------------------------------------------------------
# Wrappers
# --------------------------------------------------------------------------
def layer_apply(x, params: LayerParams, *, tn=None, tk=None):
    """Tiled path. x: [B, in_dim]; params from prepare_layer_params()."""
    B, K = x.shape
    assert K == params.in_dim, "input feature dim mismatch"
    K_pad, N_pad = params.w.shape
    B_pad = _round_up(B, 8)

    compute_dtype = params.w.dtype
    elem_bytes = jnp.dtype(compute_dtype).itemsize

    xp = x.astype(compute_dtype)
    if (B_pad, K_pad) != (B, K):
        xp = jnp.pad(xp, ((0, B_pad - B), (0, K_pad - K)))

    auto_tn, auto_tk, nbuf_w, phys = _select_tiles(B_pad, K_pad, N_pad, elem_bytes)
    tn = tn or auto_tn
    tk = tk or auto_tk
    assert N_pad % tn == 0 and K_pad % tk == 0, "tn/tk must divide padded dims"

    usage = _vmem_usage(B_pad, tk, tn, nbuf_w, elem_bytes)
    vmem_limit = int(min(phys, max(16 << 20, usage + (8 << 20))))

    grid = (N_pad // tn, K_pad // tk)

    out = pl.pallas_call(
        functools.partial(_layer_kernel_tiled, b_true=B),
        out_shape=jax.ShapeDtypeStruct((B_pad, N_pad), jnp.float32),
        grid_spec=pltpu.PrefetchScalarGridSpec(
            num_scalar_prefetch=0,
            grid=grid,
            in_specs=[
                pl.BlockSpec((B_pad, tk), lambda n, k: (0, k)),   # x
                _w_block_spec(tk, tn, nbuf_w),                    # W
                pl.BlockSpec((1, tn), lambda n, k: (0, n)),       # gamma
                pl.BlockSpec((1, tn), lambda n, k: (0, n)),       # beta
            ],
            out_specs=pl.BlockSpec((B_pad, tn), lambda n, k: (0, n)),
        ),
        compiler_params=pltpu.CompilerParams(
            dimension_semantics=("parallel", "arbitrary"),
            vmem_limit_bytes=vmem_limit,
        ),
    )(xp, params.w, params.gamma, params.beta)

    if (B_pad, N_pad) != (B, params.out_dim):
        out = out[:B, :params.out_dim]
    return out


def _fits_single_block(B, K, N, compute_dtype):
    e = jnp.dtype(compute_dtype).itemsize
    total = B * K * e + K * N * e + B * N * 4 + 2 * N * 4
    return total <= (8 << 20) and B <= 4096 and K <= 2048 and N <= 2048


def _layer_single_block(x, w, gamma, beta, compute_dtype):
    B, K = x.shape
    N = w.shape[1]
    return pl.pallas_call(
        functools.partial(_layer_kernel_single, b_true=B),
        out_shape=jax.ShapeDtypeStruct((B, N), jnp.float32),
    )(x.astype(compute_dtype), w.astype(compute_dtype),
      gamma.astype(jnp.float32).reshape(1, N),
      beta.astype(jnp.float32).reshape(1, N))


def layer_forward(x, w, gamma, beta, *, compute_dtype=jnp.bfloat16,
                  single_block=None, tn=None, tk=None):
    """Layer forward: Linear (no bias) -> BatchNorm1d(train stats) -> LeakyReLU(0.1).

    Valid only for the bn=True training-mode forward (the Linear bias cancels
    exactly under batch-statistic normalisation).
    """
    B, K = x.shape
    N = w.shape[1]
    if single_block is None:
        single_block = _fits_single_block(B, K, N, compute_dtype)
    if single_block:
        return _layer_single_block(x, w, gamma, beta, compute_dtype)
    params = prepare_layer_params(w, gamma, beta, compute_dtype=compute_dtype)
    return layer_apply(x, params, tn=tn, tk=tk)


# --------------------------------------------------------------------------
# Reference (full fidelity, INCLUDING the Linear bias)
# --------------------------------------------------------------------------
def reference_forward(x, w, b, gamma, beta):
    y = x @ w + b
    mean = y.mean(axis=0, keepdims=True)
    var = ((y - mean) ** 2).mean(axis=0, keepdims=True)  # biased, like PyTorch BN fwd
    z = gamma * (y - mean) / jnp.sqrt(var + EPS) + beta
    return jnp.where(z > 0, z, NEG_SLOPE * z)


if __name__ == "__main__":
    key = jax.random.PRNGKey(0)

    # ---- Case 1: tiny layer -> single-block fast path, f32 compute (exact) ----
    B, in_dim, out_dim = 8, 32, 32
    k1, k2, k3, k4 = jax.random.split(key, 4)
    x = jax.random.normal(k1, (B, in_dim), dtype=jnp.float32)
    bound = 1.0 / jnp.sqrt(jnp.float32(in_dim))
    w = jax.random.uniform(k2, (in_dim, out_dim), minval=-bound, maxval=bound,
                           dtype=jnp.float32)
    b = jax.random.uniform(k3, (out_dim,), minval=-bound, maxval=bound,
                           dtype=jnp.float32)
    gamma = jnp.ones((out_dim,), jnp.float32)   # BatchNorm1d default weight
    beta = jnp.zeros((out_dim,), jnp.float32)   # BatchNorm1d default bias

    out = jax.block_until_ready(
        layer_forward(x, w, gamma, beta, compute_dtype=jnp.float32))
    ref = reference_forward(x, w, b, gamma, beta)
    assert out.shape == (B, out_dim)
    assert jnp.allclose(out, ref, atol=1e-4, rtol=1e-4), "single-block f32 mismatch"

    # ---- Case 2: tiled grid path, bf16 MXU operands, hoisted param prep ----
    B2, in2, out2 = 20, 384, 256
    j1, j2, j3 = jax.random.split(k4, 3)
    x2 = jax.random.normal(j1, (B2, in2), dtype=jnp.float32)
    bound2 = 1.0 / jnp.sqrt(jnp.float32(in2))
    w2 = jax.random.uniform(j2, (in2, out2), minval=-bound2, maxval=bound2,
                            dtype=jnp.float32)
    b2 = jax.random.uniform(j3, (out2,), minval=-bound2, maxval=bound2,
                            dtype=jnp.float32)
    gamma2 = jnp.ones((out2,), jnp.float32)
    beta2 = jnp.zeros((out2,), jnp.float32)

    params2 = prepare_layer_params(w2, gamma2, beta2, compute_dtype=jnp.bfloat16)
    # Force small tiles so the demo exercises a real (2 x 3) N-parallel /
    # K-reduction grid with batch padding.
    out2_arr = jax.block_until_ready(layer_apply(x2, params2, tn=128, tk=128))
    ref2 = reference_forward(x2, w2, b2, gamma2, beta2)
    assert out2_arr.shape == (B2, out2)
    assert jnp.allclose(out2_arr, ref2, atol=5e-2, rtol=5e-2), "tiled bf16 mismatch"

    print("KERNEL_OK")
</pallas_src>

<mosaic_0001>
module attributes {stable_mosaic.version = 11 : i64} {
  func.func @_layer_kernel_single(%arg0: memref<8x32xf32, #tpu.memory_space<vmem>>, %arg1: memref<32x32xf32, #tpu.memory_space<vmem>>, %arg2: memref<1x32xf32, #tpu.memory_space<vmem>>, %arg3: memref<1x32xf32, #tpu.memory_space<vmem>>, %arg4: memref<8x32xf32, #tpu.memory_space<vmem>>) attributes {dimension_semantics = [], scalar_prefetch = 0 : i64, scratch_operands = 0 : i64, tpu.core_type = #tpu.core_type<tc>} {
    %c0 = arith.constant 0 : index
    %c0_0 = arith.constant 0 : index
    %0 = vector.load %arg0[%c0, %c0_0] : memref<8x32xf32, #tpu.memory_space<vmem>>, vector<8x32xf32>
    %c0_1 = arith.constant 0 : index
    %c0_2 = arith.constant 0 : index
    %1 = vector.load %arg1[%c0_1, %c0_2] : memref<32x32xf32, #tpu.memory_space<vmem>>, vector<32x32xf32>
    %cst = arith.constant dense<0.000000e+00> : vector<8x32xf32>
    %2 = tpu.matmul %0, %1, %cst {dimension_numbers = #tpu.dot_dimension_numbers<[1], [0], [0], [1], [0, 0, 1, 1], [], []>} : vector<8x32xf32>, vector<32x32xf32>, vector<8x32xf32> -> vector<8x32xf32>
    %c0_3 = arith.constant 0 : index
    %c0_4 = arith.constant 0 : index
    %3 = vector.load %arg2[%c0_3, %c0_4] : memref<1x32xf32, #tpu.memory_space<vmem>>, vector<1x32xf32>
    %c0_5 = arith.constant 0 : index
    %c0_6 = arith.constant 0 : index
    %4 = vector.load %arg3[%c0_5, %c0_6] : memref<1x32xf32, #tpu.memory_space<vmem>>, vector<1x32xf32>
    %cst_7 = arith.constant dense<0.000000e+00> : vector<32xf32>
    %5 = vector.multi_reduction <add>, %2, %cst_7 [0] : vector<8x32xf32> to vector<32xf32>
    %6 = vector.shape_cast %5 : vector<32xf32> to vector<1x32xf32>
    %cst_8 = arith.constant 1.250000e-01 : f32
    %7 = vector.broadcast %cst_8 : f32 to vector<1x32xf32>
    %8 = arith.mulf %6, %7 : vector<1x32xf32>
    %9 = vector.broadcast %8 : vector<1x32xf32> to vector<8x32xf32>
    %10 = arith.subf %2, %9 : vector<8x32xf32>
    %11 = arith.mulf %10, %10 : vector<8x32xf32>
    %cst_9 = arith.constant dense<0.000000e+00> : vector<32xf32>
    %12 = vector.multi_reduction <add>, %11, %cst_9 [0] : vector<8x32xf32> to vector<32xf32>
    %13 = vector.shape_cast %12 : vector<32xf32> to vector<1x32xf32>
    %cst_10 = arith.constant 1.250000e-01 : f32
    %14 = vector.broadcast %cst_10 : f32 to vector<1x32xf32>
    %15 = arith.mulf %13, %14 : vector<1x32xf32>
    %cst_11 = arith.constant 9.99999974E-6 : f32
    %16 = vector.broadcast %cst_11 : f32 to vector<1x32xf32>
    %17 = arith.addf %15, %16 : vector<1x32xf32>
    %18 = math.rsqrt %17 : vector<1x32xf32>
    %19 = arith.mulf %3, %18 : vector<1x32xf32>
    %20 = arith.mulf %8, %19 : vector<1x32xf32>
    %21 = arith.subf %4, %20 : vector<1x32xf32>
    %22 = vector.broadcast %19 : vector<1x32xf32> to vector<8x32xf32>
    %23 = arith.mulf %2, %22 : vector<8x32xf32>
    %24 = vector.broadcast %21 : vector<1x32xf32> to vector<8x32xf32>
    %25 = arith.addf %23, %24 : vector<8x32xf32>
    %cst_12 = arith.constant 1.000000e-01 : f32
    %26 = vector.broadcast %cst_12 : f32 to vector<8x32xf32>
    %27 = arith.mulf %26, %25 : vector<8x32xf32>
    %28 = arith.maximumf %25, %27 : vector<8x32xf32>
    %c0_13 = arith.constant 0 : index
    %c0_14 = arith.constant 0 : index
    %29 = vector.load %arg4[%c0_13, %c0_14] : memref<8x32xf32, #tpu.memory_space<vmem>>, vector<8x32xf32>
    tpu.vector_store %arg4[%c0_13, %c0_14], %28 {strides = array<i32>} : memref<8x32xf32, #tpu.memory_space<vmem>>, vector<8x32xf32>,
    return
  }
}

</mosaic_0001>

<llo_original>
// kernel: tpu_custom_call.1
$region0: #{tpu_custom_call.1}
  #allocation0 [shape = 'u32[]', space=smem, size = 0x4, offset = 0x4, fixed_abs, tag = 'smem constant byte address 0x4 - core index']
  #allocation1 [shape = 'u32[144,128]{1,0:T(1,128)}', space=vmem, size = 0x12000, scoped, tag = 'internal scratch']
  %s0 = inlined_call_operand.hbm [shape: f32[8,32], index: 0, kind: input, shape index: {}]
  %s1 = inlined_call_operand.hbm [shape: f32[32,32], index: 1, kind: input, shape index: {}]
  %s2 = inlined_call_operand.vmem [shape: f32[1,32], index: 2, kind: input, shape index: {}]
  %s3 = inlined_call_operand.vmem [shape: f32[1,32], index: 3, kind: input, shape index: {}]
  %s4 = inlined_call_operand.hbm [shape: f32[8,32], index: 4, kind: output, shape index: {}]
  %s5 = sld [smem:[#allocation0]]
  $region34: #{tpu_custom_call.1} parent=0
    _
  %s7 = ssub.s32 1, %s5
  %s8 = scalar_select 0, %s7, %s5
  $region1: #{tpu_custom_call.1} parent=0
    #allocation2 [shape = 'u8[4096]{0}', space=vmem, size = 0x1000, scoped, tag = 'input window, operand 0, single buffered']
    #allocation3 [shape = 's32[1]{0}', space=sflag, size = 0x4, scoped, tag = 'scoped memory for tpu_custom_call.1']
    #allocation4 [shape = 's32[1]{0}', space=sflag, size = 0x4, scoped, tag = 'scoped memory for tpu_custom_call.1']
    #allocation5 [shape = 'u8[16384]{0}', space=vmem, size = 0x4000, scoped, tag = 'input window, operand 1, single buffered']
    #allocation6 [shape = 's32[1]{0}', space=sflag, size = 0x4, scoped, tag = 'scoped memory for tpu_custom_call.1']
    #allocation7 [shape = 'u8[4096]{0}', space=vmem, size = 0x1000, scoped, tag = 'output window, operand 0, single buffered']
    %9 = vsyncpa [#allocation3], 0
    %10 = vsyncpa [#allocation6], 0
    %11 = vsyncpa [#allocation4], 0
    // Predicated region
    $region2: #{tpu_custom_call.1} parent=1 // pred_check
      _
    $region3: #{tpu_custom_call.1} parent=1 // pred_check_branch
      %13 = sbr.rel (0) target = $region5
    $region4: #{tpu_custom_call.1} parent=1 // pred_region
      %s15 = ssub.s32 128, 128
      %16 = vsyncadd [#allocation3], %s15
      %s18 = sshll.u32 [#allocation2], 4
      %s19 = int_to_ptr.vmem [resolvable:$true] %s18
      %21 = dma.hbm_to_vmem [thread:$0]  %s0, 128, %s19, [#allocation3]
    $region5: #{tpu_custom_call.1} parent=1 // pred_fallthru
      _
    // Predicated region
    $region6: #{tpu_custom_call.1} parent=1 // pred_check
      _
    $region7: #{tpu_custom_call.1} parent=1 // pred_check_branch
      %23 = sbr.rel (0) target = $region9
    $region8: #{tpu_custom_call.1} parent=1 // pred_region
      %s25 = ssub.s32 512, 512
      %26 = vsyncadd [#allocation6], %s25
      %s27 = sshll.u32 [#allocation5], 4
      %s28 = int_to_ptr.vmem [resolvable:$true] %s27
      %33 = dma.hbm_to_vmem [thread:$0]  %s1, 512, %s28, [#allocation6], 128, 128, 8
    $region9: #{tpu_custom_call.1} parent=1 // pred_fallthru
      _
    // Predicated region
    $region10: #{tpu_custom_call.1} parent=1 // pred_check
      _
    $region11: #{tpu_custom_call.1} parent=1 // pred_check_branch
      %35 = sbr.rel (0) target = $region13
    $region12: #{tpu_custom_call.1} parent=1 // pred_region
      _
    $region13: #{tpu_custom_call.1} parent=1 // pred_fallthru
      _
    // Predicated region
    $region14: #{tpu_custom_call.1} parent=1 // pred_check
      _
    $region15: #{tpu_custom_call.1} parent=1 // pred_check_branch
      %37 = sbr.rel (0) target = $region17
    $region16: #{tpu_custom_call.1} parent=1 // pred_region
      _
    $region17: #{tpu_custom_call.1} parent=1 // pred_fallthru
      _
    // Predicated region
    $region18: #{tpu_custom_call.1} parent=1 // pred_check
      _
    $region19: #{tpu_custom_call.1} parent=1 // pred_check_branch
      %39 = sbr.rel (0) target = $region21
    $region20: #{tpu_custom_call.1} parent=1 // pred_region
      %40 = dma.done [#allocation3], 128
    $region21: #{tpu_custom_call.1} parent=1 // pred_fallthru
      _
    // Predicated region
    $region22: #{tpu_custom_call.1} parent=1 // pred_check
      _
    $region23: #{tpu_custom_call.1} parent=1 // pred_check_branch
      %42 = sbr.rel (0) target = $region25
    $region24: #{tpu_custom_call.1} parent=1 // pred_region
      %43 = dma.done [#allocation6], 512
    $region25: #{tpu_custom_call.1} parent=1 // pred_fallthru
      _
    %v44 = vld [vmem:[#allocation2] sm:$0xff]
    %v45 = vld [vmem:[#allocation5] sm:$0xff]
    %v46 = vld [vmem:[#allocation5 + $0x8] sm:$0xff]
    %v47 = vld [vmem:[#allocation5 + $0x10] sm:$0xff]
    %v48 = vld [vmem:[#allocation5 + $0x18] sm:$0xff]
    %vm49 = vcmask 261120
    %v51 = vsel %vm49, %v44, 0
    %53 = vmatprep.subr.mxu0 0.0
    %54 = vmatpush1.msra.mxu0 0.0
    %55 = vmatprep.subr.mxu0 0.0
    %56 = vmatpush1.msra.mxu0 0.0
    %57 = vmatprep.subr.mxu0 0.0
    %58 = vmatpush1.msra.mxu0 0.0
    %59 = vmatprep.subr.mxu0 0.0
    %60 = vmatpush1.msra.mxu0 0.0
    %61 = vmatprep.subr.mxu0 0.0
    %62 = vmatpush1.msra.mxu0 0.0
    %63 = vmatprep.subr.mxu0 0.0
    %64 = vmatpush1.msra.mxu0 0.0
    %65 = vmatprep.subr.mxu0 0.0
    %66 = vmatpush1.msra.mxu0 0.0
    %67 = vmatprep.subr.mxu0 0.0
    %68 = vmatpush1.msra.mxu0 0.0
    %69 = vmatprep.subr.mxu0 0.0
    %70 = vmatpush1.msra.mxu0 0.0
    %71 = vmatprep.subr.mxu0 0.0
    %72 = vmatpush1.msra.mxu0 0.0
    %73 = vmatprep.subr.mxu0 0.0
    %74 = vmatpush1.msra.mxu0 0.0
    %75 = vmatprep.subr.mxu0 0.0
    %76 = vmatpush1.msra.mxu0 0.0
    %77 = vmatprep.subr.mxu0 0.0
    %78 = vmatpush1.msra.mxu0 %v48
    %79 = vmatprep.subr.mxu0 0.0
    %80 = vmatpush1.msra.mxu0 %v47
    %81 = vmatprep.subr.mxu0 0.0
    %82 = vmatpush1.msra.mxu0 %v46
    %83 = vmatprep.subr.mxu0 0.0
    %84 = vmatpush1.msra.mxu0 %v45
    %85 = vmatprep.subr.mxu0 0.0
    %86 = vmatpush2.msra.mxu0 0.0
    %87 = vmatprep.subr.mxu0 0.0
    %88 = vmatpush2.msra.mxu0 0.0
    %89 = vmatprep.subr.mxu0 0.0
    %90 = vmatpush2.msra.mxu0 0.0
    %91 = vmatprep.subr.mxu0 0.0
    %92 = vmatpush2.msra.mxu0 0.0
    %93 = vmatprep.subr.mxu0 0.0
    %94 = vmatpush2.msra.mxu0 0.0
    %95 = vmatprep.subr.mxu0 0.0
    %96 = vmatpush2.msra.mxu0 0.0
    %97 = vmatprep.subr.mxu0 0.0
    %98 = vmatpush2.msra.mxu0 0.0
    %99 = vmatprep.subr.mxu0 0.0
    %100 = vmatpush2.msra.mxu0 0.0
    %101 = vmatprep.subr.mxu0 0.0
    %102 = vmatpush2.msra.mxu0 0.0
    %103 = vmatprep.subr.mxu0 0.0
    %104 = vmatpush2.msra.mxu0 0.0
    %105 = vmatprep.subr.mxu0 0.0
    %106 = vmatpush2.msra.mxu0 0.0
    %107 = vmatprep.subr.mxu0 0.0
    %108 = vmatpush2.msra.mxu0 0.0
    %109 = vmatprep.subr.mxu0 0.0
    %110 = vmatpush2.msra.mxu0 0.0
    %111 = vmatprep.subr.mxu0 0.0
    %112 = vmatpush2.msra.mxu0 0.0
    %113 = vmatprep.subr.mxu0 0.0
    %114 = vmatpush2.msra.mxu0 0.0
    %115 = vmatprep.subr.mxu0 0.0
    %116 = vmatpush2.msra.mxu0 0.0
    %117 = vmatprep.mubr.f32.mxu0 0.0
    %118 = vmatmul.mubr.f32.gmra.mxu0 %v51
    %v119 = vpop.f32.mrf.mxu0
    %v120 = vadd.f32 0.0, %v119
    %v121 = vpop.f32.mrf.mxu0
    %122 = vdwg.mxu0
    %v123 = vld [vmem:[%s2] sm:$0x1]
    %v124 = vld [vmem:[%s3] sm:$0x1]
    %v125 = vsel %vm49, %v120, 0.0
    %v126 = vrot.slane %v125, 4
    %v127 = vadd.f32 %v125, %v126
    %v128 = vrot.slane %v127, 2
    %v129 = vadd.f32 %v127, %v128
    %v130 = vrot.slane %v129, 1
    %v131 = vadd.f32 %v129, %v130
    %v132 = vmul.f32 %v131, 0.125
    %v133 = vsub.f32 %v120, %v132
    %v134 = vmul.f32 %v133, %v133
    %v135 = vsel %vm49, %v134, 0.0
    %v136 = vrot.slane %v135, 4
    %v137 = vadd.f32 %v135, %v136
    %v138 = vrot.slane %v137, 2
    %v139 = vadd.f32 %v137, %v138
    %v140 = vrot.slane %v139, 1
    %v141 = vadd.f32 %v139, %v140
    %v142 = vmul.f32 %v141, 0.125
    %v143 = vadd.f32 %v142, 1e-05
    %v144 = vrsqrt.pop %v143
    %v145 = vmul.f32 %v123, %v144
    %v146 = vmul.f32 %v132, %v145
    %v147 = vsub.f32 %v124, %v146
    %v149 = vlaneseq
    %v150 = vshrl.u32 %v149, 7
    %v151 = vsub.s32 0, %v150
    %v152 = vrot.slane %v145, %v151
    %v154 = vmul.f32 %v120, %v152
    %v156 = vlaneseq
    %v157 = vshrl.u32 %v156, 7
    %v158 = vsub.s32 0, %v157
    %v159 = vrot.slane %v147, %v158
    %v161 = vadd.f32 %v154, %v159
    %v162 = vmul.f32 %v161, 0.1
    %v163 = vmax.f32 %v161, %v162
    %164 = vst.msk [vmem:[#allocation7] sm:$0xff] %vm49, %v163
    // Predicated region
    $region26: #{tpu_custom_call.1} parent=1 // pred_check
      _
    $region27: #{tpu_custom_call.1} parent=1 // pred_check_branch
      %166 = sbr.rel (0) target = $region29
    $region28: #{tpu_custom_call.1} parent=1 // pred_region
      %s168 = ssub.s32 128, 128
      %169 = vsyncadd [#allocation4], %s168
      %s171 = sshll.u32 [#allocation7], 4
      %s172 = int_to_ptr.vmem [resolvable:$true] %s171
      %174 = dma.vmem_to_hbm [thread:$0]  %s172, 128, %s4, [#allocation4]
    $region29: #{tpu_custom_call.1} parent=1 // pred_fallthru
      _
    // Predicated region
    $region30: #{tpu_custom_call.1} parent=1 // pred_check
      _
    $region31: #{tpu_custom_call.1} parent=1 // pred_check_branch
      %176 = sbr.rel (0) target = $region33
    $region32: #{tpu_custom_call.1} parent=1 // pred_region
      %177 = dma.done [#allocation4], 128
    $region33: #{tpu_custom_call.1} parent=1 // pred_fallthru
      _
    %178 = vsyncpa [#allocation3], 1
    %179 = vsyncpa [#allocation6], 1
    %180 = vsyncpa [#allocation4], 1

</llo_original>
